<compile_context>
chip_gen: v7x
topology: tpu7x:2x2x1
jax: 0.10.0
libtpu: 0.0.40
codegen_flags: <defaults>
</compile_context>

<pallas_src>
import jax
import jax.numpy as jnp
from jax.experimental import pallas as pl
from jax.experimental.pallas import tpu as pltpu


def _channel_gate_kernel(x_ref, w1t_ref, b1_ref, w2t_ref, b2_ref, o_ref):
    # x_ref / o_ref: (TB, C, HW) tile.  w1t: (C, hid), b1: (1, hid),
    # w2t: (hid, C), b2: (1, C).
    hw = x_ref.shape[-1]

    # Global pooling over the spatial (lane) axis: avg + max, matching
    # F.avg_pool2d / F.max_pool2d with kernel == full spatial extent.
    # Sum accumulates in f32 (identity cast for f32 inputs); max is exact
    # in the input dtype.
    avg = jnp.sum(x_ref[...].astype(jnp.float32), axis=-1) * (1.0 / hw)  # (TB, C)
    mx = jnp.max(x_ref[...], axis=-1).astype(jnp.float32)                # (TB, C)

    # Shared MLP: Linear(C -> hid) -> ReLU -> Linear(hid -> C), applied to
    # the avg and max pooled rows separately and summed afterwards
    # (== mlp(avg_pool) + mlp(max_pool) in the PyTorch forward).
    def mlp(p):  # p: (TB, C) f32
        h = jnp.dot(p, w1t_ref[...], preferred_element_type=jnp.float32)
        h = jnp.maximum(h + b1_ref[...], 0.0)                             # (TB, hid)
        return (jnp.dot(h, w2t_ref[...], preferred_element_type=jnp.float32)
                + b2_ref[...])                                            # (TB, C)

    scale = jax.nn.sigmoid(mlp(avg) + mlp(mx))                            # (TB, C) f32

    # Gating: re-read the tile (no f32 copy kept live across the MLP) and
    # multiply in the input dtype; store is lane-dense over HW.
    o_ref[...] = (x_ref[...]
                  * scale.astype(x_ref.dtype)[:, :, None]).astype(o_ref.dtype)


def _vmem_cap_bytes():
    # Physical VMEM minus ~16 MiB headroom: ~112 MiB on v5e/v6e (128 MiB
    # physical), ~48 MiB on v7x (64 MiB physical).  Conservative fallback
    # if the hardware query is unavailable.
    try:
        phys = pltpu.get_tpu_info().vmem_capacity_bytes
    except Exception:
        phys = 64 << 20
    return max(int(phys) - (16 << 20), 16 << 20)


def _pick_tb(batch, per_img_tile_bytes, per_img_vmem_bytes, vmem_budget_bytes):
    # Largest divisor of `batch` such that the batched tile targets ~4 MiB,
    # the double-buffered in+out (+ f32 temp) footprint fits the VMEM
    # budget, and >= 2 grid steps remain on the parallel batch axis so both
    # v7x TensorCores get work.
    target_tile = 4 << 20
    cap_tile = max(target_tile // max(per_img_tile_bytes, 1), 1)
    cap_vmem = max(vmem_budget_bytes // max(per_img_vmem_bytes, 1), 1)
    cap = min(cap_tile, cap_vmem)
    if batch >= 2:
        cap = min(cap, batch // 2)
    cap = max(1, min(cap, batch))
    tb = 1
    for d in range(1, cap + 1):
        if batch % d == 0:
            tb = d
    return tb


def channel_gate(x_nchw, w1, b1, w2, b2):
    """ChannelGate forward.

    x_nchw: (B, C, H, W).
    w1: (hid, C), b1: (hid,)   -- first Linear (PyTorch weight layout)
    w2: (C, hid), b2: (C,)     -- second Linear
    Returns (B, C, H, W).
    """
    B, C, H, W = x_nchw.shape
    HW = H * W
    hid = w1.shape[0]

    # Free relayouts only: flatten spatial dims (contiguous).  MLP weights
    # are pre-transposed at trace time so the kernel needs no transposes.
    x = x_nchw.reshape(B, C, HW)
    w1t = w1.T                      # (C, hid)
    w2t = w2.T                      # (hid, C)
    b1_row = b1.reshape(1, hid)
    b2_row = b2.reshape(1, C)

    itemsize = jnp.dtype(x_nchw.dtype).itemsize
    per_img_bytes = C * HW * itemsize
    # Double-buffered input + output tile, plus the f32 pooling temp for
    # sub-32-bit inputs (zero extra when the input is already f32).
    f32_tmp_per_img = 0 if itemsize >= 4 else C * HW * 4
    per_img_vmem = 4 * per_img_bytes + f32_tmp_per_img

    vmem_cap = _vmem_cap_bytes()
    weights_bytes = 4 * (2 * C * hid + C + hid)
    budget = max(vmem_cap - weights_bytes - (2 << 20), 1 << 20)

    tb = _pick_tb(B, per_img_bytes, per_img_vmem, budget)
    # TODO(synk): for production-sized CBAM where even a single-image tile
    # overflows the VMEM budget (huge C*HW), add an HW-tiled two-pass
    # variant (pool pass + scale pass); for deep stages with HW < 128
    # consider an NHWC-style (HW, C) tile so the store stays lane-dense.

    vmem_needed = tb * per_img_vmem + weights_bytes + (2 << 20)
    vmem_limit = int(min(max(vmem_needed, 16 << 20), vmem_cap))

    out = pl.pallas_call(
        _channel_gate_kernel,
        out_shape=jax.ShapeDtypeStruct((B, C, HW), x_nchw.dtype),
        grid_spec=pltpu.PrefetchScalarGridSpec(
            num_scalar_prefetch=0,
            grid=(B // tb,),
            in_specs=[
                pl.BlockSpec((tb, C, HW), lambda b: (b, 0, 0)),
                pl.BlockSpec((C, hid), lambda b: (0, 0)),
                pl.BlockSpec((1, hid), lambda b: (0, 0)),
                pl.BlockSpec((hid, C), lambda b: (0, 0)),
                pl.BlockSpec((1, C), lambda b: (0, 0)),
            ],
            out_specs=pl.BlockSpec((tb, C, HW), lambda b: (b, 0, 0)),
        ),
        compiler_params=pltpu.CompilerParams(
            dimension_semantics=("parallel",),
            vmem_limit_bytes=vmem_limit),
    )(x, w1t, b1_row, w2t, b2_row)

    return out.reshape(B, C, H, W)


def _reference(x, w1, b1, w2, b2):
    # Pure-JAX reference mirroring the PyTorch forward (pool_types=['avg','max']).
    B, C, H, W = x.shape
    xf = x.reshape(B, C, H * W).astype(jnp.float32)
    avg = jnp.mean(xf, axis=2)                    # (B, C)
    mx = jnp.max(xf, axis=2)                      # (B, C)

    def mlp(p):
        h = jnp.maximum(p @ w1.T + b1, 0.0)       # (B, hid)
        return h @ w2.T + b2                      # (B, C)

    att = mlp(avg) + mlp(mx)                      # (B, C)
    scale = jax.nn.sigmoid(att)[:, :, None, None]
    return (x.astype(jnp.float32) * scale).astype(x.dtype)


if __name__ == "__main__":
    # ChannelGate(gate_channels=32, reduction_ratio=4)
    B, C, H, W = 4, 32, 16, 16
    reduction_ratio = 4
    hid = C // reduction_ratio

    key = jax.random.PRNGKey(0)
    kx, k1, k2, k3, k4 = jax.random.split(key, 5)

    x = jax.random.normal(kx, (B, C, H, W), dtype=jnp.float32)

    # Deterministic parameter init (PyTorch Linear-style uniform bounds),
    # weights in PyTorch layout: w1 (hid, C), w2 (C, hid).
    bound1 = 1.0 / (C ** 0.5)
    bound2 = 1.0 / (hid ** 0.5)
    w1 = jax.random.uniform(k1, (hid, C), jnp.float32, -bound1, bound1)
    b1 = jax.random.uniform(k2, (hid,), jnp.float32, -bound1, bound1)
    w2 = jax.random.uniform(k3, (C, hid), jnp.float32, -bound2, bound2)
    b2 = jax.random.uniform(k4, (C,), jnp.float32, -bound2, bound2)

    y = channel_gate(x, w1, b1, w2, b2)
    y = jax.block_until_ready(y)

    y_ref = _reference(x, w1, b1, w2, b2)
    assert y.shape == (B, C, H, W)
    assert jnp.allclose(y, y_ref, atol=1e-5, rtol=1e-5), "mismatch vs reference"

    print("KERNEL_OK")
</pallas_src>

<mosaic_0001>
module attributes {stable_mosaic.version = 11 : i64} {
  func.func @_channel_gate_kernel(%arg0: i32, %arg1: memref<2x32x256xf32, #tpu.memory_space<vmem>>, %arg2: memref<32x8xf32, #tpu.memory_space<vmem>>, %arg3: memref<1x8xf32, #tpu.memory_space<vmem>>, %arg4: memref<8x32xf32, #tpu.memory_space<vmem>>, %arg5: memref<1x32xf32, #tpu.memory_space<vmem>>, %arg6: memref<2x32x256xf32, #tpu.memory_space<vmem>>) attributes {dimension_semantics = [#tpu.dimension_semantics<parallel>], iteration_bounds = array<i64: 2>, scalar_prefetch = 0 : i64, scratch_operands = 0 : i64, tpu.core_type = #tpu.core_type<tc>, window_params = [{transform_indices = @transform_0, window_bounds = array<i64: 2, 32, 256>}, {pipeline_mode = #tpu.pipeline_mode<synchronous>, transform_indices = @transform_1, window_bounds = array<i64: 32, 8>}, {pipeline_mode = #tpu.pipeline_mode<synchronous>, transform_indices = @transform_2, window_bounds = array<i64: 1, 8>}, {pipeline_mode = #tpu.pipeline_mode<synchronous>, transform_indices = @transform_3, window_bounds = array<i64: 8, 32>}, {pipeline_mode = #tpu.pipeline_mode<synchronous>, transform_indices = @transform_4, window_bounds = array<i64: 1, 32>}, {transform_indices = @transform_5, window_bounds = array<i64: 2, 32, 256>}]} {
    %c0 = arith.constant 0 : index
    %c0_0 = arith.constant 0 : index
    %c0_1 = arith.constant 0 : index
    %0 = vector.load %arg1[%c0, %c0_0, %c0_1] : memref<2x32x256xf32, #tpu.memory_space<vmem>>, vector<2x32x256xf32>
    %cst = arith.constant dense<0.000000e+00> : vector<2x32xf32>
    %1 = vector.multi_reduction <add>, %0, %cst [2] : vector<2x32x256xf32> to vector<2x32xf32>
    %cst_2 = arith.constant 3.906250e-03 : f32
    %2 = vector.broadcast %cst_2 : f32 to vector<2x32xf32>
    %3 = arith.mulf %1, %2 : vector<2x32xf32>
    %c0_3 = arith.constant 0 : index
    %c0_4 = arith.constant 0 : index
    %c0_5 = arith.constant 0 : index
    %4 = vector.load %arg1[%c0_3, %c0_4, %c0_5] : memref<2x32x256xf32, #tpu.memory_space<vmem>>, vector<2x32x256xf32>
    %cst_6 = arith.constant dense<0xFF800000> : vector<2x32xf32>
    %5 = vector.multi_reduction <maximumf>, %4, %cst_6 [2] : vector<2x32x256xf32> to vector<2x32xf32>
    %c0_7 = arith.constant 0 : index
    %c0_8 = arith.constant 0 : index
    %6 = vector.load %arg2[%c0_7, %c0_8] : memref<32x8xf32, #tpu.memory_space<vmem>>, vector<32x8xf32>
    %cst_9 = arith.constant dense<0.000000e+00> : vector<2x8xf32>
    %7 = tpu.matmul %3, %6, %cst_9 {dimension_numbers = #tpu.dot_dimension_numbers<[1], [0], [0], [1], [0, 0, 1, 1], [], []>} : vector<2x32xf32>, vector<32x8xf32>, vector<2x8xf32> -> vector<2x8xf32>
    %c0_10 = arith.constant 0 : index
    %c0_11 = arith.constant 0 : index
    %8 = vector.load %arg3[%c0_10, %c0_11] : memref<1x8xf32, #tpu.memory_space<vmem>>, vector<1x8xf32>
    %9 = vector.broadcast %8 : vector<1x8xf32> to vector<2x8xf32>
    %10 = arith.addf %7, %9 : vector<2x8xf32>
    %cst_12 = arith.constant 0.000000e+00 : f32
    %11 = vector.broadcast %cst_12 : f32 to vector<2x8xf32>
    %12 = arith.maximumf %10, %11 : vector<2x8xf32>
    %c0_13 = arith.constant 0 : index
    %c0_14 = arith.constant 0 : index
    %13 = vector.load %arg4[%c0_13, %c0_14] : memref<8x32xf32, #tpu.memory_space<vmem>>, vector<8x32xf32>
    %cst_15 = arith.constant dense<0.000000e+00> : vector<2x32xf32>
    %14 = tpu.matmul %12, %13, %cst_15 {dimension_numbers = #tpu.dot_dimension_numbers<[1], [0], [0], [1], [0, 0, 1, 1], [], []>} : vector<2x8xf32>, vector<8x32xf32>, vector<2x32xf32> -> vector<2x32xf32>
    %c0_16 = arith.constant 0 : index
    %c0_17 = arith.constant 0 : index
    %15 = vector.load %arg5[%c0_16, %c0_17] : memref<1x32xf32, #tpu.memory_space<vmem>>, vector<1x32xf32>
    %16 = vector.broadcast %15 : vector<1x32xf32> to vector<2x32xf32>
    %17 = arith.addf %14, %16 : vector<2x32xf32>
    %c0_18 = arith.constant 0 : index
    %c0_19 = arith.constant 0 : index
    %18 = vector.load %arg2[%c0_18, %c0_19] : memref<32x8xf32, #tpu.memory_space<vmem>>, vector<32x8xf32>
    %cst_20 = arith.constant dense<0.000000e+00> : vector<2x8xf32>
    %19 = tpu.matmul %5, %18, %cst_20 {dimension_numbers = #tpu.dot_dimension_numbers<[1], [0], [0], [1], [0, 0, 1, 1], [], []>} : vector<2x32xf32>, vector<32x8xf32>, vector<2x8xf32> -> vector<2x8xf32>
    %c0_21 = arith.constant 0 : index
    %c0_22 = arith.constant 0 : index
    %20 = vector.load %arg3[%c0_21, %c0_22] : memref<1x8xf32, #tpu.memory_space<vmem>>, vector<1x8xf32>
    %21 = vector.broadcast %20 : vector<1x8xf32> to vector<2x8xf32>
    %22 = arith.addf %19, %21 : vector<2x8xf32>
    %cst_23 = arith.constant 0.000000e+00 : f32
    %23 = vector.broadcast %cst_23 : f32 to vector<2x8xf32>
    %24 = arith.maximumf %22, %23 : vector<2x8xf32>
    %c0_24 = arith.constant 0 : index
    %c0_25 = arith.constant 0 : index
    %25 = vector.load %arg4[%c0_24, %c0_25] : memref<8x32xf32, #tpu.memory_space<vmem>>, vector<8x32xf32>
    %cst_26 = arith.constant dense<0.000000e+00> : vector<2x32xf32>
    %26 = tpu.matmul %24, %25, %cst_26 {dimension_numbers = #tpu.dot_dimension_numbers<[1], [0], [0], [1], [0, 0, 1, 1], [], []>} : vector<2x8xf32>, vector<8x32xf32>, vector<2x32xf32> -> vector<2x32xf32>
    %c0_27 = arith.constant 0 : index
    %c0_28 = arith.constant 0 : index
    %27 = vector.load %arg5[%c0_27, %c0_28] : memref<1x32xf32, #tpu.memory_space<vmem>>, vector<1x32xf32>
    %28 = vector.broadcast %27 : vector<1x32xf32> to vector<2x32xf32>
    %29 = arith.addf %26, %28 : vector<2x32xf32>
    %30 = arith.addf %17, %29 : vector<2x32xf32>
    %31 = arith.negf %30 : vector<2x32xf32>
    %32 = math.exp %31 : vector<2x32xf32>
    %cst_29 = arith.constant 1.000000e+00 : f32
    %33 = vector.broadcast %cst_29 : f32 to vector<2x32xf32>
    %34 = arith.addf %33, %32 : vector<2x32xf32>
    %35 = arith.divf %33, %34 : vector<2x32xf32>
    %c0_30 = arith.constant 0 : index
    %c0_31 = arith.constant 0 : index
    %c0_32 = arith.constant 0 : index
    %36 = vector.load %arg1[%c0_30, %c0_31, %c0_32] : memref<2x32x256xf32, #tpu.memory_space<vmem>>, vector<2x32x256xf32>
    %37 = vector.shape_cast %35 : vector<2x32xf32> to vector<2x32x1xf32>
    %38 = vector.broadcast %37 : vector<2x32x1xf32> to vector<2x32x256xf32>
    %39 = arith.mulf %36, %38 : vector<2x32x256xf32>
    %c0_33 = arith.constant 0 : index
    %c0_34 = arith.constant 0 : index
    %c0_35 = arith.constant 0 : index
    %40 = vector.load %arg6[%c0_33, %c0_34, %c0_35] : memref<2x32x256xf32, #tpu.memory_space<vmem>>, vector<2x32x256xf32>
    tpu.vector_store %arg6[%c0_33, %c0_34, %c0_35], %39 {strides = array<i32>} : memref<2x32x256xf32, #tpu.memory_space<vmem>>, vector<2x32x256xf32>,
    return
  }
  func.func @transform_0(%arg0: i32) -> (i32, i32, i32) {
    %c0_i32 = arith.constant 0 : i32
    %c0_i32_0 = arith.constant 0 : i32
    %c0_i32_1 = arith.constant 0 : i32
    return %arg0, %c0_i32, %c0_i32_0 : i32, i32, i32
  }
  func.func @transform_1(%arg0: i32) -> (i32, i32) {
    %c0_i32 = arith.constant 0 : i32
    %c0_i32_0 = arith.constant 0 : i32
    %c0_i32_1 = arith.constant 0 : i32
    return %c0_i32, %c0_i32_0 : i32, i32
  }
  func.func @transform_2(%arg0: i32) -> (i32, i32) {
    %c0_i32 = arith.constant 0 : i32
    %c0_i32_0 = arith.constant 0 : i32
    %c0_i32_1 = arith.constant 0 : i32
    return %c0_i32, %c0_i32_0 : i32, i32
  }
  func.func @transform_3(%arg0: i32) -> (i32, i32) {
    %c0_i32 = arith.constant 0 : i32
    %c0_i32_0 = arith.constant 0 : i32
    %c0_i32_1 = arith.constant 0 : i32
    return %c0_i32, %c0_i32_0 : i32, i32
  }
  func.func @transform_4(%arg0: i32) -> (i32, i32) {
    %c0_i32 = arith.constant 0 : i32
    %c0_i32_0 = arith.constant 0 : i32
    %c0_i32_1 = arith.constant 0 : i32
    return %c0_i32, %c0_i32_0 : i32, i32
  }
  func.func @transform_5(%arg0: i32) -> (i32, i32, i32) {
    %c0_i32 = arith.constant 0 : i32
    %c0_i32_0 = arith.constant 0 : i32
    %c0_i32_1 = arith.constant 0 : i32
    return %arg0, %c0_i32, %c0_i32_0 : i32, i32, i32
  }
}

</mosaic_0001>

<llo_original>
// kernel: tpu_custom_call.1
$region0: #{tpu_custom_call.1}
  #allocation0 [shape = 'u32[]', space=smem, size = 0x4, offset = 0x4, fixed_abs, tag = 'smem constant byte address 0x4 - core index']
  #allocation1 [shape = 'u32[144,128]{1,0:T(1,128)}', space=vmem, size = 0x12000, scoped, tag = 'internal scratch']
  %s0 = inlined_call_operand.hbm [shape: f32[4,32,256], index: 0, kind: input, shape index: {}]
  %s1 = inlined_call_operand.vmem [shape: f32[32,8], index: 1, kind: input, shape index: {}]
  %s2 = inlined_call_operand.vmem [shape: f32[1,8], index: 2, kind: input, shape index: {}]
  %s3 = inlined_call_operand.vmem [shape: f32[8,32], index: 3, kind: input, shape index: {}]
  %s4 = inlined_call_operand.vmem [shape: f32[1,32], index: 4, kind: input, shape index: {}]
  %s5 = inlined_call_operand.hbm [shape: f32[4,32,256], index: 5, kind: output, shape index: {}]
  %s6 = sld [smem:[#allocation0]]
  $region57: #{tpu_custom_call.1} parent=0
    _
  %s8 = ssub.s32 1, %s6
  %s9 = scalar_select 0, %s8, %s6
  $region1: #{tpu_custom_call.1} parent=0
    #allocation2 [shape = 'u8[131072]{0}', space=vmem, size = 0x20000, scoped, tag = 'input window, operand 0']
    #allocation3 [shape = 's32[2]{0}', space=sflag, size = 0x8, scoped, tag = 'scoped memory for tpu_custom_call.1']
    #allocation4 [shape = 's32[2]{0}', space=sflag, size = 0x8, scoped, tag = 'scoped memory for tpu_custom_call.1']
    #allocation5 [shape = 'u8[131072]{0}', space=vmem, size = 0x20000, scoped, tag = 'output window, operand 0']
    %10 = vsyncpa [#allocation3], 0
    %s11 = scalar_lea.sflag [#allocation3], 1
    %12 = vsyncpa %s11, 0
    %13 = vsyncpa [#allocation4], 0
    %s14 = scalar_lea.sflag [#allocation4], 1
    %15 = vsyncpa %s14, 0
    loop: start=0, step=1, limit=4
    $region2: #{tpu_custom_call.1} parent=1 // loop_pre_header
      _
    $region3: #{tpu_custom_call.1} parent=1 // loop_header
      %s17 = sphi 0, %s21
      %p18 = scmp.ge.s32.totalorder %s17, 4
      %s27 = sphi 0, %s29
      %s30 = sphi 0, %s27
      %s31 = sphi 0, %s30
      %s47 = sphi 0, %s31
      %s51 = sphi 0, %s51
      %s53 = sphi 0, %s51
      %s54 = sphi 0, %s53
      %s68 = sphi 0, %s54
      %s72 = sphi 0, %s72
      %s74 = sphi 0, %s72
      %s75 = sphi 0, %s74
      %s89 = sphi 0, %s75
      %s93 = sphi 0, %s93
      %s95 = sphi 0, %s93
      %s96 = sphi 0, %s95
      %s110 = sphi 0, %s96
      %s114 = sphi 0, %s114
      %s116 = sphi 0, %s114
      %s117 = sphi 0, %s116
      %s131 = sphi 0, %s117
      %s137 = sphi 0, %s139
      %s140 = sphi 0, %s137
      %s141 = sphi 0, %s140
      %s157 = sphi 0, %s141
    $region4: #{tpu_custom_call.1} parent=1 // loop_header_branch
      %20 = sbr.rel (%p18) target = $region8
    $region5: #{tpu_custom_call.1} parent=1 // loop_body
      %s22 = ssub.s32 %s17, 1
      %s23 = ssub.s32 %s17, 2
      %s24 = sadd.s32 %s17, 1
      %s25 = ssub.s32 %s17, %s24
      %p26 = scmp.eq.s32.totalorder %s25, 0
      %s28 = sadd.s32 %s27, 1
      %s29 = scalar_select %p26, %s27, %s28
      %p32 = pneg %p26
      %p33 = scmp.eq.s32.totalorder %s17, 1
      %p34 = por %p32, %p33
      %p35 = scmp.ne.s32.totalorder %s27, %s30
      %p36 = scmp.eq.s32.totalorder %s17, 0
      %p37 = por %p35, %p36
      %p38 = scmp.ne.s32.totalorder %s27, %s30
      %p39 = scmp.eq.s32.totalorder %s22, 1
      %p40 = por %p38, %p39
      %p41 = scmp.ne.s32.totalorder %s30, %s31
      %p42 = scmp.eq.s32.totalorder %s22, 0
      %p43 = por %p41, %p42
      %p44 = scmp.ne.s32.totalorder %s30, %s31
      %p45 = scmp.eq.s32.totalorder %s23, 1
      %p46 = por %p44, %p45
      %p48 = scmp.ne.s32.totalorder %s31, %s47
      %p49 = scmp.eq.s32.totalorder %s23, 0
      %p50 = por %p48, %p49
      %s52 = sadd.s32 %s51, 1
      %p55 = scmp.eq.s32.totalorder %s17, 1
      %p56 = scmp.ne.s32.totalorder %s51, %s53
      %p57 = scmp.eq.s32.totalorder %s17, 0
      %p58 = por %p56, %p57
      %p59 = scmp.ne.s32.totalorder %s51, %s53
      %p60 = scmp.eq.s32.totalorder %s22, 1
      %p61 = por %p59, %p60
      %p62 = scmp.ne.s32.totalorder %s53, %s54
      %p63 = scmp.eq.s32.totalorder %s22, 0
      %p64 = por %p62, %p63
      %p65 = scmp.ne.s32.totalorder %s53, %s54
      %p66 = scmp.eq.s32.totalorder %s23, 1
      %p67 = por %p65, %p66
      %p69 = scmp.ne.s32.totalorder %s54, %s68
      %p70 = scmp.eq.s32.totalorder %s23, 0
      %p71 = por %p69, %p70
      %s73 = sadd.s32 %s72, 1
      %p76 = scmp.eq.s32.totalorder %s17, 1
      %p77 = scmp.ne.s32.totalorder %s72, %s74
      %p78 = scmp.eq.s32.totalorder %s17, 0
      %p79 = por %p77, %p78
      %p80 = scmp.ne.s32.totalorder %s72, %s74
      %p81 = scmp.eq.s32.totalorder %s22, 1
      %p82 = por %p80, %p81
      %p83 = scmp.ne.s32.totalorder %s74, %s75
      %p84 = scmp.eq.s32.totalorder %s22, 0
      %p85 = por %p83, %p84
      %p86 = scmp.ne.s32.totalorder %s74, %s75
      %p87 = scmp.eq.s32.totalorder %s23, 1
      %p88 = por %p86, %p87
      %p90 = scmp.ne.s32.totalorder %s75, %s89
      %p91 = scmp.eq.s32.totalorder %s23, 0
      %p92 = por %p90, %p91
      %s94 = sadd.s32 %s93, 1
      %p97 = scmp.eq.s32.totalorder %s17, 1
      %p98 = scmp.ne.s32.totalorder %s93, %s95
      %p99 = scmp.eq.s32.totalorder %s17, 0
      %p100 = por %p98, %p99
      %p101 = scmp.ne.s32.totalorder %s93, %s95
      %p102 = scmp.eq.s32.totalorder %s22, 1
      %p103 = por %p101, %p102
      %p104 = scmp.ne.s32.totalorder %s95, %s96
      %p105 = scmp.eq.s32.totalorder %s22, 0
      %p106 = por %p104, %p105
      %p107 = scmp.ne.s32.totalorder %s95, %s96
      %p108 = scmp.eq.s32.totalorder %s23, 1
      %p109 = por %p107, %p108
      %p111 = scmp.ne.s32.totalorder %s96, %s110
      %p112 = scmp.eq.s32.totalorder %s23, 0
      %p113 = por %p111, %p112
      %s115 = sadd.s32 %s114, 1
      %p118 = scmp.eq.s32.totalorder %s17, 1
      %p119 = scmp.ne.s32.totalorder %s114, %s116
      %p120 = scmp.eq.s32.totalorder %s17, 0
      %p121 = por %p119, %p120
      %p122 = scmp.ne.s32.totalorder %s114, %s116
      %p123 = scmp.eq.s32.totalorder %s22, 1
      %p124 = por %p122, %p123
      %p125 = scmp.ne.s32.totalorder %s116, %s117
      %p126 = scmp.eq.s32.totalorder %s22, 0
      %p127 = por %p125, %p126
      %p128 = scmp.ne.s32.totalorder %s116, %s117
      %p129 = scmp.eq.s32.totalorder %s23, 1
      %p130 = por %p128, %p129
      %p132 = scmp.ne.s32.totalorder %s117, %s131
      %p133 = scmp.eq.s32.totalorder %s23, 0
      %p134 = por %p132, %p133
      %s135 = ssub.s32 %s17, %s24
      %p136 = scmp.eq.s32.totalorder %s135, 0
      %s138 = sadd.s32 %s137, 1
      %s139 = scalar_select %p136, %s137, %s138
      %p142 = pneg %p136
      %p143 = scmp.eq.s32.totalorder %s17, 1
      %p144 = por %p142, %p143
      %p145 = scmp.ne.s32.totalorder %s137, %s140
      %p146 = scmp.eq.s32.totalorder %s17, 0
      %p147 = por %p145, %p146
      %p148 = scmp.ne.s32.totalorder %s137, %s140
      %p149 = scmp.eq.s32.totalorder %s22, 1
      %p150 = por %p148, %p149
      %p151 = scmp.ne.s32.totalorder %s140, %s141
      %p152 = scmp.eq.s32.totalorder %s22, 0
      %p153 = por %p151, %p152
      %p154 = scmp.ne.s32.totalorder %s140, %s141
      %p155 = scmp.eq.s32.totalorder %s23, 1
      %p156 = por %p154, %p155
      %p158 = scmp.ne.s32.totalorder %s141, %s157
      %p159 = scmp.eq.s32.totalorder %s23, 0
      %p160 = por %p158, %p159
      %p161 = scmp.le.s32.totalorder 1, %s17
      %p162 = scmp.lt.s32.totalorder %s17, 3
      %p163 = pnand %p161, %p162
      %p164 = pneg %p163
      // Predicated region
      $region9: #{tpu_custom_call.1} parent=5 // pred_check
        _
      $region10: #{tpu_custom_call.1} parent=5 // pred_check_branch
        %166 = sbr.rel (%p163) target = $region12
      $region11: #{tpu_custom_call.1} parent=5 // pred_region
        %s167 = ssub.s32 %s17, 1
        // Predicated region
        $region13: #{tpu_custom_call.1} parent=11 // pred_check
          %p168 = pneg %p64
        $region14: #{tpu_custom_call.1} parent=11 // pred_check_branch
          %170 = sbr.rel (%p168) target = $region16
        $region15: #{tpu_custom_call.1} parent=11 // pred_region
          _
        $region16: #{tpu_custom_call.1} parent=11 // pred_fallthru
          _
        // Predicated region
        $region17: #{tpu_custom_call.1} parent=11 // pred_check
          %p171 = pneg %p85
        $region18: #{tpu_custom_call.1} parent=11 // pred_check_branch
          %173 = sbr.rel (%p171) target = $region20
        $region19: #{tpu_custom_call.1} parent=11 // pred_region
          _
        $region20: #{tpu_custom_call.1} parent=11 // pred_fallthru
          _
        // Predicated region
        $region21: #{tpu_custom_call.1} parent=11 // pred_check
          %p174 = pneg %p106
        $region22: #{tpu_custom_call.1} parent=11 // pred_check_branch
          %176 = sbr.rel (%p174) target = $region24
        $region23: #{tpu_custom_call.1} parent=11 // pred_region
          _
        $region24: #{tpu_custom_call.1} parent=11 // pred_fallthru
          _
        // Predicated region
        $region25: #{tpu_custom_call.1} parent=11 // pred_check
          %p177 = pneg %p127
        $region26: #{tpu_custom_call.1} parent=11 // pred_check_branch
          %179 = sbr.rel (%p177) target = $region28
        $region27: #{tpu_custom_call.1} parent=11 // pred_region
          _
        $region28: #{tpu_custom_call.1} parent=11 // pred_fallthru
          _
      $region12: #{tpu_custom_call.1} parent=5 // pred_fallthru
        _
      %p180 = scmp.lt.s32.totalorder %s17, 2
      // Predicated region
      $region29: #{tpu_custom_call.1} parent=5 // pred_check
        %p181 = pneg %p180
      $region30: #{tpu_custom_call.1} parent=5 // pred_check_branch
        %183 = sbr.rel (%p181) target = $region32
      $region31: #{tpu_custom_call.1} parent=5 // pred_region
        // Predicated region
        $region33: #{tpu_custom_call.1} parent=31 // pred_check
          %p184 = pneg %p37
        $region34: #{tpu_custom_call.1} parent=31 // pred_check_branch
          %186 = sbr.rel (%p184) target = $region36
        $region35: #{tpu_custom_call.1} parent=31 // pred_region
          %s187 = sand.u32 %s27, 1
          %s188 = scalar_lea.sflag [#allocation3], %s187
          %s189 = sand.u32 %s27, 1
          %s190 = smul.addr %s189, 128
          %s191 = scalar_lea.vmem [#allocation2], %s190
          %s192 = smul.u32 2, %s17
          %s194 = ssub.s32 2048, 2048
          %195 = vsyncadd %s188, %s194
          %s196 = smul.addr %s192, 8
          %s197 = smul.addr %s196, 128
          %s198 = scalar_lea.hbm %s0, %s197
          %s199 = sshll.u32 %s191, 4
          %s200 = int_to_ptr.vmem [resolvable:$true] %s199
          %205 = dma.hbm_to_vmem [thread:$0]  %s198, 2048, %s200, %s188, 256, 256, 16
        $region36: #{tpu_custom_call.1} parent=31 // pred_fallthru
          _
      $region32: #{tpu_custom_call.1} parent=5 // pred_fallthru
        _
      %p206 = scmp.le.s32.totalorder 1, %s17
      %p207 = scmp.lt.s32.totalorder %s17, 3
      %p208 = pnand %p206, %p207
      %p209 = pneg %p208
      // Predicated region
      $region37: #{tpu_custom_call.1} parent=5 // pred_check
        _
      $region38: #{tpu_custom_call.1} parent=5 // pred_check_branch
        %211 = sbr.rel (%p208) target = $region40
      $region39: #{tpu_custom_call.1} parent=5 // pred_region
        %s212 = ssub.s32 %s17, 1
        %s213 = sand.u32 %s30, 1
        %s214 = scalar_lea.sflag [#allocation3], %s213
        %s215 = sand.u32 %s30, 1
        %s216 = smul.addr %s215, 128
        %s217 = scalar_lea.vmem [#allocation2], %s216
        // Predicated region
        $region41: #{tpu_custom_call.1} parent=39 // pred_check
          %p218 = pneg %p43
        $region42: #{tpu_custom_call.1} parent=39 // pred_check_branch
          %220 = sbr.rel (%p218) target = $region44
        $region43: #{tpu_custom_call.1} parent=39 // pred_region
          %221 = dma.done %s214, 2048
        $region44: #{tpu_custom_call.1} parent=39 // pred_fallthru
          _
        %s222 = sand.u32 %s30, 1
        %s223 = scalar_lea.sflag [#allocation3], %s222
        %s224 = sand.u32 %s30, 1
        %s225 = smul.addr %s224, 128
        %s226 = scalar_lea.vmem [#allocation2], %s225
        %p227 = pneg %p43
        %p228 = pneg %p40
        %p229 = pneg %p64
        %p230 = pneg %p61
        %p231 = pneg %p85
        %p232 = pneg %p82
        %p233 = pneg %p106
        %p234 = pneg %p103
        %p235 = pneg %p127
        %p236 = pneg %p124
        %p237 = pneg %p153
        %p238 = pneg %p150
        %s239 = sand.u32 %s140, 1
        %s240 = scalar_lea.sflag [#allocation4], %s239
        %s241 = sand.u32 %s140, 1
        %s242 = smul.addr %s241, 128
        %s243 = scalar_lea.vmem [#allocation5], %s242
        %s244 = smul.u32 2, %s22
        %s245 = smul.u32 2, %s22
        %v246 = vld [vmem:[%s217] sm:$0xff]
        %v247 = vld [vmem:[%s217 + $0x8] sm:$0xff]
        %v248 = vld [vmem:[%s217 + $0x10] sm:$0xff]
        %v249 = vld [vmem:[%s217 + $0x18] sm:$0xff]
        %v250 = vld [vmem:[%s217 + $0x20] sm:$0xff]
        %v251 = vld [vmem:[%s217 + $0x28] sm:$0xff]
        %v252 = vld [vmem:[%s217 + $0x30] sm:$0xff]
        %v253 = vld [vmem:[%s217 + $0x38] sm:$0xff]
        %v254 = vld [vmem:[%s217 + $0x40] sm:$0xff]
        %v255 = vld [vmem:[%s217 + $0x48] sm:$0xff]
        %v256 = vld [vmem:[%s217 + $0x50] sm:$0xff]
        %v257 = vld [vmem:[%s217 + $0x58] sm:$0xff]
        %v258 = vld [vmem:[%s217 + $0x60] sm:$0xff]
        %v259 = vld [vmem:[%s217 + $0x68] sm:$0xff]
        %v260 = vld [vmem:[%s217 + $0x70] sm:$0xff]
        %v261 = vld [vmem:[%s217 + $0x78] sm:$0xff]
        %v262 = vadd.f32 %v246, %v247
        %263 = vadd.xlane.f32.xlu0 %v262
        %v264 = vpop.xlane.xlu0 %263
        %v265 = vadd.f32 %v248, %v249
        %266 = vadd.xlane.f32.xlu0 %v265
        %v267 = vpop.xlane.xlu0 %266
        %v268 = vadd.f32 %v250, %v251
        %269 = vadd.xlane.f32.xlu0 %v268
        %v270 = vpop.xlane.xlu0 %269
        %v271 = vadd.f32 %v252, %v253
        %272 = vadd.xlane.f32.xlu0 %v271
        %v273 = vpop.xlane.xlu0 %272
        %v274 = vadd.f32 %v254, %v255
        %275 = vadd.xlane.f32.xlu0 %v274
        %v276 = vpop.xlane.xlu0 %275
        %v277 = vadd.f32 %v256, %v257
        %278 = vadd.xlane.f32.xlu0 %v277
        %v279 = vpop.xlane.xlu0 %278
        %v280 = vadd.f32 %v258, %v259
        %281 = vadd.xlane.f32.xlu0 %v280
        %v282 = vpop.xlane.xlu0 %281
        %v283 = vadd.f32 %v260, %v261
        %284 = vadd.xlane.f32.xlu0 %v283
        %v285 = vpop.xlane.xlu0 %284
        %v286 = vmul.f32 %v264, 0.00390625
        %v287 = vmul.f32 %v267, 0.00390625
        %v288 = vmul.f32 %v270, 0.00390625
        %v289 = vmul.f32 %v273, 0.00390625
        %v290 = vmul.f32 %v276, 0.00390625
        %v291 = vmul.f32 %v279, 0.00390625
        %v292 = vmul.f32 %v282, 0.00390625
        %v293 = vmul.f32 %v285, 0.00390625
        %v294 = vmax.f32 %v246, %v247
        %295 = vmax.xlane.f32.xlu0 %v294
        %v296 = vpop.xlane.xlu0 %295
        %v297 = vmax.f32 %v248, %v249
        %298 = vmax.xlane.f32.xlu0 %v297
        %v299 = vpop.xlane.xlu0 %298
        %v300 = vmax.f32 %v250, %v251
        %301 = vmax.xlane.f32.xlu0 %v300
        %v302 = vpop.xlane.xlu0 %301
        %v303 = vmax.f32 %v252, %v253
        %304 = vmax.xlane.f32.xlu0 %v303
        %v305 = vpop.xlane.xlu0 %304
        %v306 = vmax.f32 %v254, %v255
        %307 = vmax.xlane.f32.xlu0 %v306
        %v308 = vpop.xlane.xlu0 %307
        %v309 = vmax.f32 %v256, %v257
        %310 = vmax.xlane.f32.xlu0 %v309
        %v311 = vpop.xlane.xlu0 %310
        %v312 = vmax.f32 %v258, %v259
        %313 = vmax.xlane.f32.xlu0 %v312
        %v314 = vpop.xlane.xlu0 %313
        %v315 = vmax.f32 %v260, %v261
        %316 = vmax.xlane.f32.xlu0 %v315
        %v317 = vpop.xlane.xlu0 %316
        %v318 = vld [vmem:[%s1] sm:$0xff]
        %v319 = vld [vmem:[%s1 + $0x8] sm:$0xff]
        %v320 = vld [vmem:[%s1 + $0x10] sm:$0xff]
        %v321 = vld [vmem:[%s1 + $0x18] sm:$0xff]
        %v322 = vld [vmem:[%s2] sm:$0x1]
        %v324 = vlaneseq
        %v325 = vshrl.u32 %v324, 7
        %v326 = vsub.s32 0, %v325
        %v327 = vrot.slane %v322, %v326
        %v337 = vlaneseq
        %v338 = vand.u32 %v337, 127
        %v339 = vlaneseq
        %v340 = vshrl.u32 %v339, 7
        %v341 = vsub.s32 %v338, %v340
        %v342 = vrot.slane %v286, %v341
        %v343 = vadd.s32 %v338, 4294967288
        %v344 = vlaneseq
        %v345 = vshrl.u32 %v344, 7
        %v346 = vsub.s32 %v343, %v345
        %v347 = vrot.slane %v287, %v346
        %vm348 = vcmask 130112
        %v349 = vsel %vm348, %v347, %v342
        %v350 = vadd.s32 %v338, 4294967280
        %v351 = vlaneseq
        %v352 = vshrl.u32 %v351, 7
        %v353 = vsub.s32 %v350, %v352
        %v354 = vrot.slane %v288, %v353
        %vm355 = vcmask 195712
        %v356 = vsel %vm355, %v354, %v349
        %v357 = vadd.s32 %v338, 4294967272
        %v358 = vlaneseq
        %v359 = vshrl.u32 %v358, 7
        %v360 = vsub.s32 %v357, %v359
        %v361 = vrot.slane %v289, %v360
        %vm362 = vcmask 261312
        %v363 = vsel %vm362, %v361, %v356
        %v364 = vlaneseq
        %v365 = vshrl.u32 %v364, 7
        %v366 = vsub.s32 %v338, %v365
        %v367 = vrot.slane %v290, %v366
        %v368 = vlaneseq
        %v369 = vshrl.u32 %v368, 7
        %v370 = vsub.s32 %v343, %v369
        %v371 = vrot.slane %v291, %v370
        %v372 = vsel %vm348, %v371, %v367
        %v373 = vlaneseq
        %v374 = vshrl.u32 %v373, 7
        %v375 = vsub.s32 %v350, %v374
        %v376 = vrot.slane %v292, %v375
        %v377 = vsel %vm355, %v376, %v372
        %v378 = vlaneseq
        %v379 = vshrl.u32 %v378, 7
        %v380 = vsub.s32 %v357, %v379
        %v381 = vrot.slane %v293, %v380
        %v382 = vsel %vm362, %v381, %v377
        %vm383 = vcmask 1041409
        %v384 = vsel %vm383, %v382, %v363
        %vm385 = vcmask 261120
        %v386 = vsel %vm385, %v384, 0
        %388 = vmatprep.subr.mxu0 0.0
        %389 = vmatpush1.msra.mxu0 %v318
        %390 = vmatprep.subr.mxu0 0.0
        %391 = vmatpush1.msra.mxu0 %v319
        %392 = vmatprep.subr.mxu0 0.0
        %393 = vmatpush1.msra.mxu0 %v320
        %394 = vmatprep.subr.mxu0 0.0
        %395 = vmatpush1.msra.mxu0 %v321
        %396 = vmatprep.subr.mxu0 0.0
        %397 = vmatpush1.msra.mxu0 0.0
        %398 = vmatprep.subr.mxu0 0.0
        %399 = vmatpush1.msra.mxu0 0.0
        %400 = vmatprep.subr.mxu0 0.0
        %401 = vmatpush1.msra.mxu0 0.0
        %402 = vmatprep.subr.mxu0 0.0
        %403 = vmatpush1.msra.mxu0 0.0
        %404 = vmatprep.subr.mxu0 0.0
        %405 = vmatpush1.msra.mxu0 0.0
        %406 = vmatprep.subr.mxu0 0.0
        %407 = vmatpush1.msra.mxu0 0.0
        %408 = vmatprep.subr.mxu0 0.0
        %409 = vmatpush1.msra.mxu0 0.0
        %410 = vmatprep.subr.mxu0 0.0
        %411 = vmatpush1.msra.mxu0 0.0
        %412 = vmatprep.subr.mxu0 0.0
        %413 = vmatpush1.msra.mxu0 0.0
        %414 = vmatprep.subr.mxu0 0.0
        %415 = vmatpush1.msra.mxu0 0.0
        %416 = vmatprep.subr.mxu0 0.0
        %417 = vmatpush1.msra.mxu0 0.0
        %418 = vmatprep.subr.mxu0 0.0
        %419 = vmatpush1.msra.mxu0 0.0
        %420 = vmatprep.subr.mxu0 0.0
        %421 = vmatpush1.msra.mxu0 0.0
        %422 = vmatprep.subr.mxu0 0.0
        %423 = vmatpush1.msra.mxu0 0.0
        %424 = vmatprep.subr.mxu0 0.0
        %425 = vmatpush1.msra.mxu0 0.0
        %426 = vmatprep.subr.mxu0 0.0
        %427 = vmatpush1.msra.mxu0 0.0
        %428 = vmatprep.subr.mxu0 0.0
        %429 = vmatpush1.msra.mxu0 0.0
        %430 = vmatprep.subr.mxu0 0.0
        %431 = vmatpush1.msra.mxu0 0.0
        %432 = vmatprep.subr.mxu0 0.0
        %433 = vmatpush1.msra.mxu0 0.0
        %434 = vmatprep.subr.mxu0 0.0
        %435 = vmatpush1.msra.mxu0 0.0
        %436 = vmatprep.subr.mxu0 0.0
        %437 = vmatpush1.msra.mxu0 0.0
        %438 = vmatprep.subr.mxu0 0.0
        %439 = vmatpush1.msra.mxu0 0.0
        %440 = vmatprep.subr.mxu0 0.0
        %441 = vmatpush1.msra.mxu0 0.0
        %442 = vmatprep.subr.mxu0 0.0
        %443 = vmatpush1.msra.mxu0 0.0
        %444 = vmatprep.subr.mxu0 0.0
        %445 = vmatpush1.msra.mxu0 0.0
        %446 = vmatprep.subr.mxu0 0.0
        %447 = vmatpush1.msra.mxu0 0.0
        %448 = vmatprep.subr.mxu0 0.0
        %449 = vmatpush1.msra.mxu0 0.0
        %450 = vmatprep.subr.mxu0 0.0
        %451 = vmatpush1.msra.mxu0 0.0
        %452 = vmatprep.mubr.f32.mxu0 0.0
        %453 = vmatmul.mubr.f32.gmra.mrb[0].mxu0 %v386
        %v454 = vpop.f32.mrb[0].mxu0
        %v455 = vadd.f32 %v327, %v454
        %v456 = vpop.f32.mrb[0].mxu0
        %457 = vdwg.mxu0
        %v458 = vmax.f32 %v455, 0.0
        %v459 = vld [vmem:[%s3] sm:$0xff]
        %v460 = vld [vmem:[%s4] sm:$0x1]
        %v462 = vlaneseq
        %v463 = vshrl.u32 %v462, 7
        %v464 = vsub.s32 0, %v463
        %v465 = vrot.slane %v460, %v464
        %vm467 = vcmask 64512
        %v469 = vsel %vm467, %v458, 0
        %471 = vmatprep.subr.mxu0 0.0
        %472 = vmatpush1.msra.mxu0 %v459
        %473 = vmatprep.subr.mxu0 0.0
        %474 = vmatpush1.msra.mxu0 0.0
        %475 = vmatprep.subr.mxu0 0.0
        %476 = vmatpush1.msra.mxu0 0.0
        %477 = vmatprep.subr.mxu0 0.0
        %478 = vmatpush1.msra.mxu0 0.0
        %479 = vmatprep.subr.mxu0 0.0
        %480 = vmatpush1.msra.mxu0 0.0
        %481 = vmatprep.subr.mxu0 0.0
        %482 = vmatpush1.msra.mxu0 0.0
        %483 = vmatprep.subr.mxu0 0.0
        %484 = vmatpush1.msra.mxu0 0.0
        %485 = vmatprep.subr.mxu0 0.0
        %486 = vmatpush1.msra.mxu0 0.0
        %487 = vmatprep.subr.mxu0 0.0
        %488 = vmatpush1.msra.mxu0 0.0
        %489 = vmatprep.subr.mxu0 0.0
        %490 = vmatpush1.msra.mxu0 0.0
        %491 = vmatprep.subr.mxu0 0.0
        %492 = vmatpush1.msra.mxu0 0.0
        %493 = vmatprep.subr.mxu0 0.0
        %494 = vmatpush1.msra.mxu0 0.0
        %495 = vmatprep.subr.mxu0 0.0
        %496 = vmatpush1.msra.mxu0 0.0
        %497 = vmatprep.subr.mxu0 0.0
        %498 = vmatpush1.msra.mxu0 0.0
        %499 = vmatprep.subr.mxu0 0.0
        %500 = vmatpush1.msra.mxu0 0.0
        %501 = vmatprep.subr.mxu0 0.0
        %502 = vmatpush1.msra.mxu0 0.0
        %503 = vmatprep.subr.mxu0 0.0
        %504 = vmatpush1.msra.mxu0 0.0
        %505 = vmatprep.subr.mxu0 0.0
        %506 = vmatpush1.msra.mxu0 0.0
        %507 = vmatprep.subr.mxu0 0.0
        %508 = vmatpush1.msra.mxu0 0.0
        %509 = vmatprep.subr.mxu0 0.0
        %510 = vmatpush1.msra.mxu0 0.0
        %511 = vmatprep.subr.mxu0 0.0
        %512 = vmatpush1.msra.mxu0 0.0
        %513 = vmatprep.subr.mxu0 0.0
        %514 = vmatpush1.msra.mxu0 0.0
        %515 = vmatprep.subr.mxu0 0.0
        %516 = vmatpush1.msra.mxu0 0.0
        %517 = vmatprep.subr.mxu0 0.0
        %518 = vmatpush1.msra.mxu0 0.0
        %519 = vmatprep.subr.mxu0 0.0
        %520 = vmatpush1.msra.mxu0 0.0
        %521 = vmatprep.subr.mxu0 0.0
        %522 = vmatpush1.msra.mxu0 0.0
        %523 = vmatprep.subr.mxu0 0.0
        %524 = vmatpush1.msra.mxu0 0.0
        %525 = vmatprep.subr.mxu0 0.0
        %526 = vmatpush1.msra.mxu0 0.0
        %527 = vmatprep.subr.mxu0 0.0
        %528 = vmatpush1.msra.mxu0 0.0
        %529 = vmatprep.subr.mxu0 0.0
        %530 = vmatpush1.msra.mxu0 0.0
        %531 = vmatprep.subr.mxu0 0.0
        %532 = vmatpush1.msra.mxu0 0.0
        %533 = vmatprep.subr.mxu0 0.0
        %534 = vmatpush1.msra.mxu0 0.0
        %535 = vmatprep.mubr.f32.mxu0 0.0
        %536 = vmatmul.mubr.f32.gmra.mrb[0].mxu0 %v469
        %v537 = vpop.f32.mrb[0].mxu0
        %v538 = vadd.f32 %v465, %v537
        %v539 = vpop.f32.mrb[0].mxu0
        %540 = vdwg.mxu0
        %v549 = vlaneseq
        %v550 = vshrl.u32 %v549, 7
        %v551 = vsub.s32 %v338, %v550
        %v552 = vrot.slane %v296, %v551
        %v553 = vlaneseq
        %v554 = vshrl.u32 %v553, 7
        %v555 = vsub.s32 %v343, %v554
        %v556 = vrot.slane %v299, %v555
        %v557 = vsel %vm348, %v556, %v552
        %v558 = vlaneseq
        %v559 = vshrl.u32 %v558, 7
        %v560 = vsub.s32 %v350, %v559
        %v561 = vrot.slane %v302, %v560
        %v562 = vsel %vm355, %v561, %v557
        %v563 = vlaneseq
        %v564 = vshrl.u32 %v563, 7
        %v565 = vsub.s32 %v357, %v564
        %v566 = vrot.slane %v305, %v565
        %v567 = vsel %vm362, %v566, %v562
        %v568 = vlaneseq
        %v569 = vshrl.u32 %v568, 7
        %v570 = vsub.s32 %v338, %v569
        %v571 = vrot.slane %v308, %v570
        %v572 = vlaneseq
        %v573 = vshrl.u32 %v572, 7
        %v574 = vsub.s32 %v343, %v573
        %v575 = vrot.slane %v311, %v574
        %v576 = vsel %vm348, %v575, %v571
        %v577 = vlaneseq
        %v578 = vshrl.u32 %v577, 7
        %v579 = vsub.s32 %v350, %v578
        %v580 = vrot.slane %v314, %v579
        %v581 = vsel %vm355, %v580, %v576
        %v582 = vlaneseq
        %v583 = vshrl.u32 %v582, 7
        %v584 = vsub.s32 %v357, %v583
        %v585 = vrot.slane %v317, %v584
        %v586 = vsel %vm362, %v585, %v581
        %v587 = vsel %vm383, %v586, %v567
        %v588 = vsel %vm385, %v587, 0
        %590 = vmatprep.subr.mxu0 0.0
        %591 = vmatpush1.msra.mxu0 %v318
        %592 = vmatprep.subr.mxu0 0.0
        %593 = vmatpush1.msra.mxu0 %v319
        %594 = vmatprep.subr.mxu0 0.0
        %595 = vmatpush1.msra.mxu0 %v320
        %596 = vmatprep.subr.mxu0 0.0
        %597 = vmatpush1.msra.mxu0 %v321
        %598 = vmatprep.subr.mxu0 0.0
        %599 = vmatpush1.msra.mxu0 0.0
        %600 = vmatprep.subr.mxu0 0.0
        %601 = vmatpush1.msra.mxu0 0.0
        %602 = vmatprep.subr.mxu0 0.0
        %603 = vmatpush1.msra.mxu0 0.0
        %604 = vmatprep.subr.mxu0 0.0
        %605 = vmatpush1.msra.mxu0 0.0
        %606 = vmatprep.subr.mxu0 0.0
        %607 = vmatpush1.msra.mxu0 0.0
        %608 = vmatprep.subr.mxu0 0.0
        %609 = vmatpush1.msra.mxu0 0.0
        %610 = vmatprep.subr.mxu0 0.0
        %611 = vmatpush1.msra.mxu0 0.0
        %612 = vmatprep.subr.mxu0 0.0
        %613 = vmatpush1.msra.mxu0 0.0
        %614 = vmatprep.subr.mxu0 0.0
        %615 = vmatpush1.msra.mxu0 0.0
        %616 = vmatprep.subr.mxu0 0.0
        %617 = vmatpush1.msra.mxu0 0.0
        %618 = vmatprep.subr.mxu0 0.0
        %619 = vmatpush1.msra.mxu0 0.0
        %620 = vmatprep.subr.mxu0 0.0
        %621 = vmatpush1.msra.mxu0 0.0
        %622 = vmatprep.subr.mxu0 0.0
        %623 = vmatpush1.msra.mxu0 0.0
        %624 = vmatprep.subr.mxu0 0.0
        %625 = vmatpush1.msra.mxu0 0.0
        %626 = vmatprep.subr.mxu0 0.0
        %627 = vmatpush1.msra.mxu0 0.0
        %628 = vmatprep.subr.mxu0 0.0
        %629 = vmatpush1.msra.mxu0 0.0
        %630 = vmatprep.subr.mxu0 0.0
        %631 = vmatpush1.msra.mxu0 0.0
        %632 = vmatprep.subr.mxu0 0.0
        %633 = vmatpush1.msra.mxu0 0.0
        %634 = vmatprep.subr.mxu0 0.0
        %635 = vmatpush1.msra.mxu0 0.0
        %636 = vmatprep.subr.mxu0 0.0
        %637 = vmatpush1.msra.mxu0 0.0
        %638 = vmatprep.subr.mxu0 0.0
        %639 = vmatpush1.msra.mxu0 0.0
        %640 = vmatprep.subr.mxu0 0.0
        %641 = vmatpush1.msra.mxu0 0.0
        %642 = vmatprep.subr.mxu0 0.0
        %643 = vmatpush1.msra.mxu0 0.0
        %644 = vmatprep.subr.mxu0 0.0
        %645 = vmatpush1.msra.mxu0 0.0
        %646 = vmatprep.subr.mxu0 0.0
        %647 = vmatpush1.msra.mxu0 0.0
        %648 = vmatprep.subr.mxu0 0.0
        %649 = vmatpush1.msra.mxu0 0.0
        %650 = vmatprep.subr.mxu0 0.0
        %651 = vmatpush1.msra.mxu0 0.0
        %652 = vmatprep.subr.mxu0 0.0
        %653 = vmatpush1.msra.mxu0 0.0
        %654 = vmatprep.mubr.f32.mxu0 0.0
        %655 = vmatmul.mubr.f32.gmra.mrb[0].mxu0 %v588
        %v656 = vpop.f32.mrb[0].mxu0
        %v657 = vadd.f32 %v327, %v656
        %v658 = vpop.f32.mrb[0].mxu0
        %659 = vdwg.mxu0
        %v660 = vmax.f32 %v657, 0.0
        %v662 = vsel %vm467, %v660, 0
        %664 = vmatprep.subr.mxu0 0.0
        %665 = vmatpush1.msra.mxu0 %v459
        %666 = vmatprep.subr.mxu0 0.0
        %667 = vmatpush1.msra.mxu0 0.0
        %668 = vmatprep.subr.mxu0 0.0
        %669 = vmatpush1.msra.mxu0 0.0
        %670 = vmatprep.subr.mxu0 0.0
        %671 = vmatpush1.msra.mxu0 0.0
        %672 = vmatprep.subr.mxu0 0.0
        %673 = vmatpush1.msra.mxu0 0.0
        %674 = vmatprep.subr.mxu0 0.0
        %675 = vmatpush1.msra.mxu0 0.0
        %676 = vmatprep.subr.mxu0 0.0
        %677 = vmatpush1.msra.mxu0 0.0
        %678 = vmatprep.subr.mxu0 0.0
        %679 = vmatpush1.msra.mxu0 0.0
        %680 = vmatprep.subr.mxu0 0.0
        %681 = vmatpush1.msra.mxu0 0.0
        %682 = vmatprep.subr.mxu0 0.0
        %683 = vmatpush1.msra.mxu0 0.0
        %684 = vmatprep.subr.mxu0 0.0
        %685 = vmatpush1.msra.mxu0 0.0
        %686 = vmatprep.subr.mxu0 0.0
        %687 = vmatpush1.msra.mxu0 0.0
        %688 = vmatprep.subr.mxu0 0.0
        %689 = vmatpush1.msra.mxu0 0.0
        %690 = vmatprep.subr.mxu0 0.0
        %691 = vmatpush1.msra.mxu0 0.0
        %692 = vmatprep.subr.mxu0 0.0
        %693 = vmatpush1.msra.mxu0 0.0
        %694 = vmatprep.subr.mxu0 0.0
        %695 = vmatpush1.msra.mxu0 0.0
        %696 = vmatprep.subr.mxu0 0.0
        %697 = vmatpush1.msra.mxu0 0.0
        %698 = vmatprep.subr.mxu0 0.0
        %699 = vmatpush1.msra.mxu0 0.0
        %700 = vmatprep.subr.mxu0 0.0
        %701 = vmatpush1.msra.mxu0 0.0
        %702 = vmatprep.subr.mxu0 0.0
        %703 = vmatpush1.msra.mxu0 0.0
        %704 = vmatprep.subr.mxu0 0.0
        %705 = vmatpush1.msra.mxu0 0.0
        %706 = vmatprep.subr.mxu0 0.0
        %707 = vmatpush1.msra.mxu0 0.0
        %708 = vmatprep.subr.mxu0 0.0
        %709 = vmatpush1.msra.mxu0 0.0
        %710 = vmatprep.subr.mxu0 0.0
        %711 = vmatpush1.msra.mxu0 0.0
        %712 = vmatprep.subr.mxu0 0.0
        %713 = vmatpush1.msra.mxu0 0.0
        %714 = vmatprep.subr.mxu0 0.0
        %715 = vmatpush1.msra.mxu0 0.0
        %716 = vmatprep.subr.mxu0 0.0
        %717 = vmatpush1.msra.mxu0 0.0
        %718 = vmatprep.subr.mxu0 0.0
        %719 = vmatpush1.msra.mxu0 0.0
        %720 = vmatprep.subr.mxu0 0.0
        %721 = vmatpush1.msra.mxu0 0.0
        %722 = vmatprep.subr.mxu0 0.0
        %723 = vmatpush1.msra.mxu0 0.0
        %724 = vmatprep.subr.mxu0 0.0
        %725 = vmatpush1.msra.mxu0 0.0
        %726 = vmatprep.subr.mxu0 0.0
        %727 = vmatpush1.msra.mxu0 0.0
        %728 = vmatprep.mubr.f32.mxu0 0.0
        %729 = vmatmul.mubr.f32.gmra.mrb[0].mxu0 %v662
        %v730 = vpop.f32.mrb[0].mxu0
        %v731 = vadd.f32 %v465, %v730
        %v732 = vpop.f32.mrb[0].mxu0
        %733 = vdwg.mxu0
        %v734 = vadd.f32 %v538, %v731
        %v735 = vxor.u32 %v734, 2147483648
        %v736 = vmul.f32 %v735, 1.442695
        %v737 = vpow.pop %v736
        %v738 = vadd.f32 %v737, 1.0
        %v739 = vrcp.pop %v738
        %v740 = vmul.f32 1.0, %v739
        %v741 = vlaneseq
        %v742 = vshrl.u32 %v741, 7
        %v743 = vsub.s32 0, %v742
        %v744 = vrot.slane %v740, %v743
        %746 = vbcast.lane.b32.xlu0 %v744, 256
        %v747 = vpop.permute.xlu0 %746
        %s749 = sor.u32 256, 8
        %750 = vbcast.lane.b32.xlu0 %v744, %s749
        %v751 = vpop.permute.xlu0 %750
        %s753 = sor.u32 256, 16
        %754 = vbcast.lane.b32.xlu0 %v744, %s753
        %v755 = vpop.permute.xlu0 %754
        %s757 = sor.u32 256, 24
        %758 = vbcast.lane.b32.xlu0 %v744, %s757
        %v759 = vpop.permute.xlu0 %758
        %v760 = vlaneseq
        %v761 = vshrl.u32 %v760, 7
        %v762 = vsub.s32 1, %v761
        %v763 = vrot.slane %v740, %v762
        %765 = vbcast.lane.b32.xlu0 %v763, 256
        %v766 = vpop.permute.xlu0 %765
        %s768 = sor.u32 256, 8
        %769 = vbcast.lane.b32.xlu0 %v763, %s768
        %v770 = vpop.permute.xlu0 %769
        %s772 = sor.u32 256, 16
        %773 = vbcast.lane.b32.xlu0 %v763, %s772
        %v774 = vpop.permute.xlu0 %773
        %s776 = sor.u32 256, 24
        %777 = vbcast.lane.b32.xlu0 %v763, %s776
        %v778 = vpop.permute.xlu0 %777
        %v779 = vmul.f32 %v246, %v747
        %v780 = vmul.f32 %v247, %v747
        %v781 = vmul.f32 %v248, %v751
        %v782 = vmul.f32 %v249, %v751
        %v783 = vmul.f32 %v250, %v755
        %v784 = vmul.f32 %v251, %v755
        %v785 = vmul.f32 %v252, %v759
        %v786 = vmul.f32 %v253, %v759
        %v787 = vmul.f32 %v254, %v766
        %v788 = vmul.f32 %v255, %v766
        %v789 = vmul.f32 %v256, %v770
        %v790 = vmul.f32 %v257, %v770
        %v791 = vmul.f32 %v258, %v774
        %v792 = vmul.f32 %v259, %v774
        %v793 = vmul.f32 %v260, %v778
        %v794 = vmul.f32 %v261, %v778
        %795 = vst [vmem:[%s243] sm:$0xff] %v779
        %796 = vst [vmem:[%s243 + $0x8] sm:$0xff] %v780
        %797 = vst [vmem:[%s243 + $0x10] sm:$0xff] %v781
        %798 = vst [vmem:[%s243 + $0x18] sm:$0xff] %v782
        %799 = vst [vmem:[%s243 + $0x20] sm:$0xff] %v783
        %800 = vst [vmem:[%s243 + $0x28] sm:$0xff] %v784
        %801 = vst [vmem:[%s243 + $0x30] sm:$0xff] %v785
        %802 = vst [vmem:[%s243 + $0x38] sm:$0xff] %v786
        %803 = vst [vmem:[%s243 + $0x40] sm:$0xff] %v787
        %804 = vst [vmem:[%s243 + $0x48] sm:$0xff] %v788
        %805 = vst [vmem:[%s243 + $0x50] sm:$0xff] %v789
        %806 = vst [vmem:[%s243 + $0x58] sm:$0xff] %v790
        %807 = vst [vmem:[%s243 + $0x60] sm:$0xff] %v791
        %808 = vst [vmem:[%s243 + $0x68] sm:$0xff] %v792
        %809 = vst [vmem:[%s243 + $0x70] sm:$0xff] %v793
        %810 = vst [vmem:[%s243 + $0x78] sm:$0xff] %v794
        %s811 = sand.u32 %s140, 1
        %s812 = scalar_lea.sflag [#allocation4], %s811
        %s813 = sand.u32 %s140, 1
        %s814 = smul.addr %s813, 128
        %s815 = scalar_lea.vmem [#allocation5], %s814
        // Predicated region
        $region45: #{tpu_custom_call.1} parent=39 // pred_check
          %p816 = pneg %p150
        $region46: #{tpu_custom_call.1} parent=39 // pred_check_branch
          %818 = sbr.rel (%p816) target = $region48
        $region47: #{tpu_custom_call.1} parent=39 // pred_region
          %s819 = smul.u32 2, %s22
          %s821 = ssub.s32 2048, 2048
          %822 = vsyncadd %s812, %s821
          %s823 = smul.addr %s819, 8
          %s824 = smul.addr %s823, 128
          %s825 = scalar_lea.hbm %s5, %s824
          %s826 = sshll.u32 %s815, 4
          %s827 = int_to_ptr.vmem [resolvable:$true] %s826
          %832 = dma.vmem_to_hbm [thread:$0]  %s827, 2048, %s825, %s812, 256, 256, 16
        $region48: #{tpu_custom_call.1} parent=39 // pred_fallthru
          _
      $region40: #{tpu_custom_call.1} parent=5 // pred_fallthru
        _
      %p833 = scmp.le.s32.totalorder 2, %s17
      // Predicated region
      $region49: #{tpu_custom_call.1} parent=5 // pred_check
        %p834 = pneg %p833
      $region50: #{tpu_custom_call.1} parent=5 // pred_check_branch
        %836 = sbr.rel (%p834) target = $region52
      $region51: #{tpu_custom_call.1} parent=5 // pred_region
        %s837 = ssub.s32 %s17, 2
        // Predicated region
        $region53: #{tpu_custom_call.1} parent=51 // pred_check
          %p838 = pneg %p156
        $region54: #{tpu_custom_call.1} parent=51 // pred_check_branch
          %840 = sbr.rel (%p838) target = $region56
        $region55: #{tpu_custom_call.1} parent=51 // pred_region
          %s841 = sand.u32 %s141, 1
          %s842 = scalar_lea.sflag [#allocation4], %s841
          %s843 = sand.u32 %s141, 1
          %s844 = smul.addr %s843, 128
          %s845 = scalar_lea.vmem [#allocation5], %s844
          %846 = dma.done %s842, 2048
        $region56: #{tpu_custom_call.1} parent=51 // pred_fallthru
          _
      $region52: #{tpu_custom_call.1} parent=5 // pred_fallthru
        _
    $region6: #{tpu_custom_call.1} parent=1 // loop_footer
      %s21 = sadd.s32 1, %s17
    $region7: #{tpu_custom_call.1} parent=1 // loop_footer_branch
      %16 = sbr.rel target = $region3
    $region8: #{tpu_custom_call.1} parent=1 // loop_exit
      _
    %847 = vsyncpa [#allocation3], 1
    %s848 = scalar_lea.sflag [#allocation3], 1
    %849 = vsyncpa %s848, 1
    %850 = vsyncpa [#allocation4], 1
    %s851 = scalar_lea.sflag [#allocation4], 1
    %852 = vsyncpa %s851, 1

</llo_original>
